<compile_context>
chip_gen: v6e
topology: v6e:2x2x1
jax: 0.10.0
libtpu: 0.0.40
codegen_flags: <defaults>
</compile_context>

<pallas_src>
import functools

import jax
import jax.numpy as jnp
from jax.experimental import pallas as pl
from jax.experimental.pallas import tpu as pltpu


def _round_up(a, b):
    return ((a + b - 1) // b) * b


def _chip_config():
    """Per-generation tile defaults + VMEM capacity."""
    try:
        vmem_cap = int(pltpu.get_tpu_info().vmem_capacity_bytes)
    except Exception:
        vmem_cap = 64 << 20
    try:
        kind = jax.devices()[0].device_kind.lower()
    except Exception:
        kind = ""
    if vmem_cap <= (64 << 20) or "v7" in kind:
        # v7x-class: 64 MiB VMEM, 2 TensorCores -> smaller te, keep >=2 row tiles.
        return dict(tm=512, te=256, vmem_cap=vmem_cap, two_cores=True)
    if "v6" in kind:
        # v6e: needs tm ~1024 at bf16 to be MXU-bound on weight streaming.
        return dict(tm=1024, te=512, vmem_cap=vmem_cap, two_cores=False)
    # v5e and unknown chips: already MXU-bound at tm=512 / te=512.
    return dict(tm=512, te=512, vmem_cap=vmem_cap, two_cores=False)


# ----------------------------- Pallas kernel --------------------------------
def _swiglu_kernel(beta_ref, x_ref, wu_ref, bu_ref, w2t_ref, b2_ref, o_ref,
                   acc_ref, *, te, compute_dtype):
    j = pl.program_id(1)

    x = x_ref[...]                                               # (tm, n_feat) bf16

    # Single fused up+gate projection: wu tile = [W1^T tile | Wg^T tile].
    hg = jnp.dot(x, wu_ref[...], preferred_element_type=jnp.float32) + bu_ref[...]
    h = hg[:, :te]                                               # (tm, te) f32
    g = hg[:, te:]                                               # (tm, te) f32

    beta = beta_ref[0]
    # sigmoid(z) = 0.5*(tanh(z/2)+1): one EUP op, exact.
    sig = 0.5 * (jnp.tanh((0.5 * beta) * h) + 1.0)
    a = (h * sig) * g                                            # (tm, te) f32

    # Partial down-projection for this expansion tile (explicit bf16 cast for MXU;
    # correctness relies on the f32 VMEM accumulator below).
    partial = jnp.dot(a.astype(compute_dtype), w2t_ref[...],
                      preferred_element_type=jnp.float32)        # (tm, n_feat) f32

    @pl.when(j == 0)
    def _():
        acc_ref[...] = partial          # store directly: no zero-init + RMW

    @pl.when(j > 0)
    def _():
        acc_ref[...] += partial

    @pl.when(j == pl.num_programs(1) - 1)
    def _():
        o_ref[...] = (acc_ref[...] + b2_ref[...]).astype(o_ref.dtype)


# ----------------------- one-time weight preparation --------------------------
def prepare_swiglu_params(params, *, block_e=None, compute_dtype=jnp.bfloat16):
    """Transpose / pad / interleave / cast weights ONCE (not per forward call)."""
    w1, b1 = params["W1"], params["b1"]          # (E, n_feat), (E,)
    wg, bg = params["Wg"], params["bg"]          # (E, n_feat), (E,)
    w2, b2 = params["W2"], params["b2"]          # (n_feat, E), (n_feat,)
    n_exp, n_feat = w1.shape

    if block_e is None:
        block_e = _chip_config()["te"]
    te = min(block_e, n_exp)
    e_pad = pl.cdiv(n_exp, te) * te
    pad_e = e_pad - n_exp

    # Zero padding keeps the math exact: padded columns give h = g = 0 (zero bias),
    # so a = 0, and the padded rows of W2^T are zero as well.
    w1t = jnp.pad(w1.T, ((0, 0), (0, pad_e))).astype(compute_dtype)   # (n_feat, e_pad)
    wgt = jnp.pad(wg.T, ((0, 0), (0, pad_e))).astype(compute_dtype)   # (n_feat, e_pad)
    b1p = jnp.pad(b1.astype(jnp.float32), (0, pad_e))
    bgp = jnp.pad(bg.astype(jnp.float32), (0, pad_e))

    n_tiles = e_pad // te
    # Tile-interleaved layout: expansion tile j holds [W1^T tile j | Wg^T tile j].
    wu = jnp.concatenate(
        [w1t.reshape(n_feat, n_tiles, te), wgt.reshape(n_feat, n_tiles, te)],
        axis=2).reshape(n_feat, 2 * e_pad)
    bu = jnp.concatenate(
        [b1p.reshape(n_tiles, te), bgp.reshape(n_tiles, te)],
        axis=1).reshape(1, 2 * e_pad)

    w2t = jnp.pad(w2.T, ((0, pad_e), (0, 0))).astype(compute_dtype)   # (e_pad, n_feat)
    b2p = b2.astype(jnp.float32).reshape(1, n_feat)
    beta = jnp.asarray(params["beta"], jnp.float32).reshape(1)

    return dict(wu=wu, bu=bu, w2t=w2t, b2=b2p, beta=beta,
                n_feat=n_feat, n_exp=n_exp, e_pad=e_pad, te=te,
                compute_dtype=compute_dtype)


# ------------------------------ JAX wrapper ----------------------------------
def swiglu_forward(x, params, *, block_m=None):
    """x: (..., n_feat) -> (..., n_feat). Matches the PyTorch module's forward."""
    prepared = params if "wu" in params else prepare_swiglu_params(params)

    cfg = _chip_config()
    n_feat = prepared["n_feat"]
    te = prepared["te"]
    e_pad = prepared["e_pad"]
    compute_dtype = prepared["compute_dtype"]

    orig_shape = x.shape
    out_dtype = x.dtype
    x2 = x.reshape(-1, n_feat).astype(compute_dtype)
    m = x2.shape[0]

    tm = min(block_m if block_m is not None else cfg["tm"], m)
    # On 2-TC chips keep >=2 row tiles so the "parallel" axis actually splits.
    if cfg["two_cores"] and m >= 256 and pl.cdiv(m, tm) < 2:
        tm = _round_up(pl.cdiv(m, 2), 8)
    m_pad = pl.cdiv(m, tm) * tm
    if m_pad != m:
        x2 = jnp.pad(x2, ((0, m_pad - m), (0, 0)))

    grid = (m_pad // tm, e_pad // te)

    # VMEM budget from actual tile footprint (double-buffered inputs/outputs + acc).
    cbytes = jnp.dtype(compute_dtype).itemsize
    obytes = jnp.dtype(out_dtype).itemsize
    tile_bytes = (
        2 * (tm * n_feat * cbytes)            # x tile
        + 2 * (n_feat * 2 * te * cbytes)      # [W1^T | Wg^T] tile
        + 2 * (2 * te * 4)                    # [b1 | bg] tile (f32)
        + 2 * (te * n_feat * cbytes)          # W2^T tile
        + 2 * (n_feat * 4)                    # b2
        + 2 * (tm * n_feat * obytes)          # out tile
        + tm * n_feat * 4                     # f32 accumulator scratch
    )
    needed = tile_bytes + (2 << 20)
    vmem_limit = int(min(max(needed * 5 // 4, 32 << 20), int(cfg["vmem_cap"] * 0.85)))
    vmem_limit = max(vmem_limit, needed)

    kernel = functools.partial(_swiglu_kernel, te=te, compute_dtype=compute_dtype)

    out = pl.pallas_call(
        kernel,
        out_shape=jax.ShapeDtypeStruct((m_pad, n_feat), out_dtype),
        grid_spec=pltpu.PrefetchScalarGridSpec(
            num_scalar_prefetch=0,
            grid=grid,
            in_specs=[
                pl.BlockSpec(memory_space=pltpu.MemorySpace.SMEM),        # beta (scalar)
                pl.BlockSpec((tm, n_feat),     lambda i, j: (i, 0)),      # x rows (bf16)
                pl.BlockSpec((n_feat, 2 * te), lambda i, j: (0, j)),      # [W1^T|Wg^T] tile
                pl.BlockSpec((1, 2 * te),      lambda i, j: (0, j)),      # [b1|bg] tile
                pl.BlockSpec((te, n_feat),     lambda i, j: (j, 0)),      # W2^T tile
                pl.BlockSpec((1, n_feat),      lambda i, j: (0, 0)),      # b2
            ],
            out_specs=pl.BlockSpec((tm, n_feat), lambda i, j: (i, 0)),
            scratch_shapes=[pltpu.VMEM((tm, n_feat), jnp.float32)],
        ),
        compiler_params=pltpu.CompilerParams(
            dimension_semantics=("parallel", "arbitrary"),
            vmem_limit_bytes=vmem_limit,
        ),
    )(prepared["beta"], x2, prepared["wu"], prepared["bu"],
      prepared["w2t"], prepared["b2"])

    if m_pad != m:
        out = out[:m]
    return out.reshape(orig_shape)


# ------------------------- pure-JAX reference --------------------------------
def reference_forward(x, params):
    beta = params["beta"]
    h = x @ params["W1"].T + params["b1"]
    g = x @ params["Wg"].T + params["bg"]
    a = (h * jax.nn.sigmoid(beta * h)) * g
    return a @ params["W2"].T + params["b2"]


# --------------------------------- main ---------------------------------------
if __name__ == "__main__":
    key = jax.random.PRNGKey(0)
    # Small correctness shapes only; real benchmarking should use n_feat / E that
    # are multiples of 256 (128 on v5e) for lane-dense stores and MXU alignment.
    n_b, n_seq = 2, 8
    n_feat, n_feat_exp = 32, 64
    swish_beta = 1.0

    ks = jax.random.split(key, 8)
    x = jax.random.normal(ks[0], (n_b, n_seq, n_feat), jnp.float32)

    def lin_w(k, out_f, in_f):
        bound = 1.0 / (in_f ** 0.5)
        return jax.random.uniform(k, (out_f, in_f), jnp.float32, -bound, bound)

    def lin_b(k, out_f, in_f):
        bound = 1.0 / (in_f ** 0.5)
        return jax.random.uniform(k, (out_f,), jnp.float32, -bound, bound)

    params = {
        "W1": lin_w(ks[1], n_feat_exp, n_feat),
        "b1": lin_b(ks[2], n_feat_exp, n_feat),
        "Wg": lin_w(ks[3], n_feat_exp, n_feat),
        "bg": lin_b(ks[4], n_feat_exp, n_feat),
        "W2": lin_w(ks[5], n_feat, n_feat_exp),
        "b2": lin_b(ks[6], n_feat, n_feat_exp),
        "beta": jnp.float32(swish_beta),
    }

    # TODO(synk): torch.utils.checkpoint (activation rematerialization) is a
    # training/autograd concern; only the forward math is implemented here.
    prepared = prepare_swiglu_params(params)      # one-time weight prep (bf16, fused)
    out = swiglu_forward(x, prepared)
    out = jax.block_until_ready(out)
    ref = reference_forward(x, params)

    assert out.shape == (n_b, n_seq, n_feat)
    max_err = float(jnp.max(jnp.abs(out - ref)))
    # bf16 MXU math with f32 accumulation -> bf16-level tolerance.
    assert jnp.allclose(out, ref, atol=2e-2, rtol=2e-2), f"max abs err={max_err}"
    print("KERNEL_OK")
</pallas_src>

<mosaic_0001>
module attributes {stable_mosaic.version = 11 : i64} {
  func.func @_swiglu_kernel(%arg0: i32, %arg1: i32, %arg2: memref<1xf32, #tpu.memory_space<smem>>, %arg3: memref<16x32xbf16, #tpu.memory_space<vmem>>, %arg4: memref<32x128xbf16, #tpu.memory_space<vmem>>, %arg5: memref<1x128xf32, #tpu.memory_space<vmem>>, %arg6: memref<64x32xbf16, #tpu.memory_space<vmem>>, %arg7: memref<1x32xf32, #tpu.memory_space<vmem>>, %arg8: memref<16x32xf32, #tpu.memory_space<vmem>>, %arg9: memref<16x32xf32, #tpu.memory_space<vmem>>) attributes {dimension_semantics = [#tpu.dimension_semantics<parallel>, #tpu.dimension_semantics<arbitrary>], iteration_bounds = array<i64: 1, 1>, scalar_prefetch = 0 : i64, scratch_operands = 1 : i64, tpu.core_type = #tpu.core_type<tc>, window_params = [{transform_indices = @transform_0, window_bounds = array<i64: 1>}, {transform_indices = @transform_1, window_bounds = array<i64: 16, 32>}, {transform_indices = @transform_2, window_bounds = array<i64: 32, 128>}, {transform_indices = @transform_3, window_bounds = array<i64: 1, 128>}, {transform_indices = @transform_4, window_bounds = array<i64: 64, 32>}, {pipeline_mode = #tpu.pipeline_mode<synchronous>, transform_indices = @transform_5, window_bounds = array<i64: 1, 32>}, {transform_indices = @transform_6, window_bounds = array<i64: 16, 32>}]} {
    %c0 = arith.constant 0 : index
    %c0_0 = arith.constant 0 : index
    %0 = vector.load %arg3[%c0, %c0_0] : memref<16x32xbf16, #tpu.memory_space<vmem>>, vector<16x32xbf16>
    %c0_1 = arith.constant 0 : index
    %c0_2 = arith.constant 0 : index
    %1 = vector.load %arg4[%c0_1, %c0_2] : memref<32x128xbf16, #tpu.memory_space<vmem>>, vector<32x128xbf16>
    %cst = arith.constant dense<0.000000e+00> : vector<16x128xf32>
    %2 = tpu.matmul %0, %1, %cst {dimension_numbers = #tpu.dot_dimension_numbers<[1], [0], [0], [1], [0, 0, 1, 1], [], []>} : vector<16x32xbf16>, vector<32x128xbf16>, vector<16x128xf32> -> vector<16x128xf32>
    %c0_3 = arith.constant 0 : index
    %c0_4 = arith.constant 0 : index
    %3 = vector.load %arg5[%c0_3, %c0_4] : memref<1x128xf32, #tpu.memory_space<vmem>>, vector<1x128xf32>
    %4 = vector.broadcast %3 : vector<1x128xf32> to vector<16x128xf32>
    %5 = arith.addf %2, %4 : vector<16x128xf32>
    %6 = vector.extract_strided_slice %5 {offsets = [0, 0], sizes = [16, 64], strides = [1, 1]} : vector<16x128xf32> to vector<16x64xf32>
    %7 = vector.extract_strided_slice %5 {offsets = [0, 64], sizes = [16, 64], strides = [1, 1]} : vector<16x128xf32> to vector<16x64xf32>
    %c0_5 = arith.constant 0 : index
    %8 = memref.load %arg2[%c0_5] : memref<1xf32, #tpu.memory_space<smem>>
    %cst_6 = arith.constant 5.000000e-01 : f32
    %9 = arith.mulf %cst_6, %8 : f32
    %10 = vector.broadcast %9 : f32 to vector<16x64xf32>
    %11 = arith.mulf %10, %6 : vector<16x64xf32>
    %12 = math.tanh %11 : vector<16x64xf32>
    %cst_7 = arith.constant 1.000000e+00 : f32
    %13 = vector.broadcast %cst_7 : f32 to vector<16x64xf32>
    %14 = arith.addf %12, %13 : vector<16x64xf32>
    %cst_8 = arith.constant 5.000000e-01 : f32
    %15 = vector.broadcast %cst_8 : f32 to vector<16x64xf32>
    %16 = arith.mulf %15, %14 : vector<16x64xf32>
    %17 = arith.mulf %6, %16 : vector<16x64xf32>
    %18 = arith.mulf %17, %7 : vector<16x64xf32>
    %19 = arith.truncf %18 : vector<16x64xf32> to vector<16x64xbf16>
    %c0_9 = arith.constant 0 : index
    %c0_10 = arith.constant 0 : index
    %20 = vector.load %arg6[%c0_9, %c0_10] : memref<64x32xbf16, #tpu.memory_space<vmem>>, vector<64x32xbf16>
    %cst_11 = arith.constant dense<0.000000e+00> : vector<16x32xf32>
    %21 = tpu.matmul %19, %20, %cst_11 {dimension_numbers = #tpu.dot_dimension_numbers<[1], [0], [0], [1], [0, 0, 1, 1], [], []>} : vector<16x64xbf16>, vector<64x32xbf16>, vector<16x32xf32> -> vector<16x32xf32>
    %c0_i32 = arith.constant 0 : i32
    %22 = arith.cmpi eq, %arg1, %c0_i32 : i32
    %23 = arith.extui %22 : i1 to i32
    %c0_i32_12 = arith.constant 0 : i32
    %24 = arith.cmpi ne, %23, %c0_i32_12 : i32
    scf.if %24 {
      %c0_17 = arith.constant 0 : index
      %c0_18 = arith.constant 0 : index
      %31 = vector.load %arg9[%c0_17, %c0_18] : memref<16x32xf32, #tpu.memory_space<vmem>>, vector<16x32xf32>
      tpu.vector_store %arg9[%c0_17, %c0_18], %21 {strides = array<i32>} : memref<16x32xf32, #tpu.memory_space<vmem>>, vector<16x32xf32>,
    } else {
    }
    %c0_i32_13 = arith.constant 0 : i32
    %25 = arith.cmpi sgt, %arg1, %c0_i32_13 : i32
    %26 = arith.extui %25 : i1 to i32
    %c0_i32_14 = arith.constant 0 : i32
    %27 = arith.cmpi ne, %26, %c0_i32_14 : i32
    scf.if %27 {
      %c0_17 = arith.constant 0 : index
      %c0_18 = arith.constant 0 : index
      %31 = vector.load %arg9[%c0_17, %c0_18] : memref<16x32xf32, #tpu.memory_space<vmem>>, vector<16x32xf32>
      %32 = arith.addf %31, %21 : vector<16x32xf32>
      %c0_19 = arith.constant 0 : index
      %c0_20 = arith.constant 0 : index
      %33 = vector.load %arg9[%c0_19, %c0_20] : memref<16x32xf32, #tpu.memory_space<vmem>>, vector<16x32xf32>
      tpu.vector_store %arg9[%c0_19, %c0_20], %32 {strides = array<i32>} : memref<16x32xf32, #tpu.memory_space<vmem>>, vector<16x32xf32>,
    } else {
    }
    %c0_i32_15 = arith.constant 0 : i32
    %28 = arith.cmpi eq, %arg1, %c0_i32_15 : i32
    %29 = arith.extui %28 : i1 to i32
    %c0_i32_16 = arith.constant 0 : i32
    %30 = arith.cmpi ne, %29, %c0_i32_16 : i32
    scf.if %30 {
      %c0_17 = arith.constant 0 : index
      %c0_18 = arith.constant 0 : index
      %31 = vector.load %arg9[%c0_17, %c0_18] : memref<16x32xf32, #tpu.memory_space<vmem>>, vector<16x32xf32>
      %c0_19 = arith.constant 0 : index
      %c0_20 = arith.constant 0 : index
      %32 = vector.load %arg7[%c0_19, %c0_20] : memref<1x32xf32, #tpu.memory_space<vmem>>, vector<1x32xf32>
      %33 = vector.broadcast %32 : vector<1x32xf32> to vector<16x32xf32>
      %34 = arith.addf %31, %33 : vector<16x32xf32>
      %c0_21 = arith.constant 0 : index
      %c0_22 = arith.constant 0 : index
      %35 = vector.load %arg8[%c0_21, %c0_22] : memref<16x32xf32, #tpu.memory_space<vmem>>, vector<16x32xf32>
      tpu.vector_store %arg8[%c0_21, %c0_22], %34 {strides = array<i32>} : memref<16x32xf32, #tpu.memory_space<vmem>>, vector<16x32xf32>,
    } else {
    }
    return
  }
  func.func @transform_0(%arg0: i32, %arg1: i32) -> i32 {
    %c0_i32 = arith.constant 0 : i32
    %c0_i32_0 = arith.constant 0 : i32
    return %c0_i32 : i32
  }
  func.func @transform_1(%arg0: i32, %arg1: i32) -> (i32, i32) {
    %c0_i32 = arith.constant 0 : i32
    %c0_i32_0 = arith.constant 0 : i32
    return %arg0, %c0_i32 : i32, i32
  }
  func.func @transform_2(%arg0: i32, %arg1: i32) -> (i32, i32) {
    %c0_i32 = arith.constant 0 : i32
    %c0_i32_0 = arith.constant 0 : i32
    return %c0_i32, %arg1 : i32, i32
  }
  func.func @transform_3(%arg0: i32, %arg1: i32) -> (i32, i32) {
    %c0_i32 = arith.constant 0 : i32
    %c0_i32_0 = arith.constant 0 : i32
    return %c0_i32, %arg1 : i32, i32
  }
  func.func @transform_4(%arg0: i32, %arg1: i32) -> (i32, i32) {
    %c0_i32 = arith.constant 0 : i32
    %c0_i32_0 = arith.constant 0 : i32
    return %arg1, %c0_i32 : i32, i32
  }
  func.func @transform_5(%arg0: i32, %arg1: i32) -> (i32, i32) {
    %c0_i32 = arith.constant 0 : i32
    %c0_i32_0 = arith.constant 0 : i32
    %c0_i32_1 = arith.constant 0 : i32
    return %c0_i32, %c0_i32_0 : i32, i32
  }
  func.func @transform_6(%arg0: i32, %arg1: i32) -> (i32, i32) {
    %c0_i32 = arith.constant 0 : i32
    %c0_i32_0 = arith.constant 0 : i32
    return %arg0, %c0_i32 : i32, i32
  }
}

</mosaic_0001>

<llo_original>
// kernel: tpu_custom_call.1
$region0: #{tpu_custom_call.1}
  #allocation0 [shape = 'u32[]', space=smem, size = 0x4, offset = 0x4, fixed_abs, tag = 'smem constant byte address 0x4 - core index']
  #allocation1 [shape = 'u32[144,128]{1,0:T(1,128)}', space=vmem, size = 0x12000, scoped, tag = 'internal scratch']
  #allocation2 [shape = 'f32[16,32]{1,0:T(8,128)}', space=vmem, size = 0x2000, scoped, tag = 'scratch operand']
  #allocation3 [shape = 'f32[1]{0:T(128)S(6)}', space=smem, size = 0x200, scoped, tag = 'scoped memory for tpu_custom_call.1']
  %s0 = inlined_call_operand.<no memory space> [shape: f32[1], index: 0, kind: input, shape index: {}]
  %s1 = inlined_call_operand.vmem [shape: bf16[16,32], index: 1, kind: input, shape index: {}]
  %s2 = inlined_call_operand.vmem [shape: bf16[32,128], index: 2, kind: input, shape index: {}]
  %s3 = inlined_call_operand.vmem [shape: f32[1,128], index: 3, kind: input, shape index: {}]
  %s4 = inlined_call_operand.vmem [shape: bf16[64,32], index: 4, kind: input, shape index: {}]
  %s5 = inlined_call_operand.vmem [shape: f32[1,32], index: 5, kind: input, shape index: {}]
  %s6 = inlined_call_operand.hbm [shape: f32[16,32], index: 6, kind: output, shape index: {}]
  %s7 = sld [smem:[#allocation0]]
  $region46: #{tpu_custom_call.1} parent=0
    _
  %s9 = ssub.s32 1, %s7
  %s10 = scalar_select 0, %s9, %s7
  %11 = sst [smem:[#allocation3]] %s0
  $region1: #{tpu_custom_call.1} parent=0
    #allocation4 [shape = 'u8[8192]{0}', space=vmem, size = 0x2000, scoped, tag = 'output window, operand 0, single buffered']
    #allocation5 [shape = 's32[1]{0}', space=sflag, size = 0x4, scoped, tag = 'scoped memory for tpu_custom_call.1']
    %12 = vsyncpa [#allocation5], 0
    // Predicated region
    $region2: #{tpu_custom_call.1} parent=1 // pred_check
      _
    $region3: #{tpu_custom_call.1} parent=1 // pred_check_branch
      %14 = sbr.rel (0) target = $region5
    $region4: #{tpu_custom_call.1} parent=1 // pred_region
      _
    $region5: #{tpu_custom_call.1} parent=1 // pred_fallthru
      _
    // Predicated region
    $region6: #{tpu_custom_call.1} parent=1 // pred_check
      _
    $region7: #{tpu_custom_call.1} parent=1 // pred_check_branch
      %16 = sbr.rel (0) target = $region9
    $region8: #{tpu_custom_call.1} parent=1 // pred_region
      _
    $region9: #{tpu_custom_call.1} parent=1 // pred_fallthru
      _
    // Predicated region
    $region10: #{tpu_custom_call.1} parent=1 // pred_check
      _
    $region11: #{tpu_custom_call.1} parent=1 // pred_check_branch
      %18 = sbr.rel (0) target = $region13
    $region12: #{tpu_custom_call.1} parent=1 // pred_region
      _
    $region13: #{tpu_custom_call.1} parent=1 // pred_fallthru
      _
    // Predicated region
    $region14: #{tpu_custom_call.1} parent=1 // pred_check
      _
    $region15: #{tpu_custom_call.1} parent=1 // pred_check_branch
      %20 = sbr.rel (0) target = $region17
    $region16: #{tpu_custom_call.1} parent=1 // pred_region
      _
    $region17: #{tpu_custom_call.1} parent=1 // pred_fallthru
      _
    // Predicated region
    $region18: #{tpu_custom_call.1} parent=1 // pred_check
      _
    $region19: #{tpu_custom_call.1} parent=1 // pred_check_branch
      %22 = sbr.rel (0) target = $region21
    $region20: #{tpu_custom_call.1} parent=1 // pred_region
      _
    $region21: #{tpu_custom_call.1} parent=1 // pred_fallthru
      _
    // Predicated region
    $region22: #{tpu_custom_call.1} parent=1 // pred_check
      _
    $region23: #{tpu_custom_call.1} parent=1 // pred_check_branch
      %24 = sbr.rel (0) target = $region25
    $region24: #{tpu_custom_call.1} parent=1 // pred_region
      _
    $region25: #{tpu_custom_call.1} parent=1 // pred_fallthru
      _
    %v26 = vld [vmem:[%s1] sm:$0xf]
    %v27 = vld [vmem:[%s1 + $0x4] sm:$0xf]
    %v28 = vld [vmem:[%s2] sm:$0xf]
    %v29 = vld [vmem:[%s2 + $0x4] sm:$0xf]
    %v30 = vld [vmem:[%s2 + $0x8] sm:$0xf]
    %v31 = vld [vmem:[%s2 + $0xc] sm:$0xf]
    %v32 = vld [vmem:[%s3] sm:$0x1]
    %v34 = vlaneseq
    %v35 = vshrl.u32 %v34, 7
    %v36 = vsub.s32 0, %v35
    %v37 = vrot.slane %v32, %v36
    %v41 = vunpack.c.l.b16 %v26
    %v42 = vunpack.c.l.b16 %v27
    %v43 = vpack.c.b16 %v42, %v41
    %v48 = vunpack.c.l.b16 %v28
    %v49 = vunpack.c.l.b16 %v29
    %v50 = vunpack.c.l.b16 %v30
    %v51 = vunpack.c.l.b16 %v31
    %v52 = vpack.c.b16 %v49, %v48
    %v53 = vpack.c.b16 %v51, %v50
    %vm56 = vcmask 261120
    %v58 = vsel %vm56, %v43, 0
    %60 = vmatprep.subr.bf16.mxu0 0
    %61 = vmatpush1.bf16.msra.mxu0 0
    %62 = vmatprep.subr.bf16.mxu0 0
    %63 = vmatpush1.bf16.msra.mxu0 0
    %64 = vmatprep.subr.bf16.mxu0 0
    %65 = vmatpush1.bf16.msra.mxu0 0
    %66 = vmatprep.subr.bf16.mxu0 0
    %67 = vmatpush1.bf16.msra.mxu0 0
    %68 = vmatprep.subr.bf16.mxu0 0
    %69 = vmatpush1.bf16.msra.mxu0 0
    %70 = vmatprep.subr.bf16.mxu0 0
    %71 = vmatpush1.bf16.msra.mxu0 0
    %72 = vmatprep.subr.bf16.mxu0 0
    %73 = vmatpush1.bf16.msra.mxu0 %v53
    %74 = vmatprep.subr.bf16.mxu0 0
    %75 = vmatpush1.bf16.msra.mxu0 %v52
    %76 = vmatprep.subr.bf16.mxu0 0
    %77 = vmatpush2.bf16.msra.mxu0 0
    %78 = vmatprep.subr.bf16.mxu0 0
    %79 = vmatpush2.bf16.msra.mxu0 0
    %80 = vmatprep.subr.bf16.mxu0 0
    %81 = vmatpush2.bf16.msra.mxu0 0
    %82 = vmatprep.subr.bf16.mxu0 0
    %83 = vmatpush2.bf16.msra.mxu0 0
    %84 = vmatprep.subr.bf16.mxu0 0
    %85 = vmatpush2.bf16.msra.mxu0 0
    %86 = vmatprep.subr.bf16.mxu0 0
    %87 = vmatpush2.bf16.msra.mxu0 0
    %88 = vmatprep.subr.bf16.mxu0 0
    %89 = vmatpush2.bf16.msra.mxu0 0
    %90 = vmatprep.subr.bf16.mxu0 0
    %91 = vmatpush2.bf16.msra.mxu0 0
    %92 = vmatprep.mubr.bf16.mxu0 0
    %93 = vmatmul.mubr.bf16.gmra.mxu0 %v58
    %v94 = vpop.f32.mrf.mxu0
    %v95 = vadd.f32 %v37, %v94
    %v96 = vpop.f32.mrf.mxu0
    %v97 = vpop.f32.mrf.mxu0
    %v98 = vadd.f32 %v37, %v97
    %v99 = vpop.f32.mrf.mxu0
    %100 = vdwg.mxu0
    %s101 = sld [smem:[#allocation3]]
    %s102 = smul.f32 %s101, 0.5
    %v103 = vstv %s102
    %v104 = vmul.f32 %v103, %v95
    %v105 = vmul.f32 %v103, %v98
    %v106 = vtanh.pop %v104
    %v107 = vtanh.pop %v105
    %v108 = vadd.f32 %v106, 1.0
    %v109 = vadd.f32 %v107, 1.0
    %v110 = vmul.f32 %v108, 0.5
    %v111 = vmul.f32 %v109, 0.5
    %v112 = vmul.f32 %v95, %v110
    %v113 = vmul.f32 %v98, %v111
    %116 = vrot.lane.b32.xlu0 %v95, 64
    %v117 = vpop.permute.xlu0 %116
    %118 = vrot.lane.b32.xlu0 %v98, 64
    %v119 = vpop.permute.xlu0 %118
    %v122 = vmul.f32 %v112, %v117
    %v123 = vmul.f32 %v113, %v119
    %v124 = vpack.c.bf16 %v123, %v122
    %v125 = vld [vmem:[%s4] sm:$0xf]
    %v126 = vld [vmem:[%s4 + $0x4] sm:$0xf]
    %v127 = vld [vmem:[%s4 + $0x8] sm:$0xf]
    %v128 = vld [vmem:[%s4 + $0xc] sm:$0xf]
    %v129 = vld [vmem:[%s4 + $0x10] sm:$0xf]
    %v130 = vld [vmem:[%s4 + $0x14] sm:$0xf]
    %v131 = vld [vmem:[%s4 + $0x18] sm:$0xf]
    %v132 = vld [vmem:[%s4 + $0x1c] sm:$0xf]
    %v141 = vunpack.c.l.b16 %v125
    %v142 = vunpack.c.l.b16 %v126
    %v143 = vunpack.c.l.b16 %v127
    %v144 = vunpack.c.l.b16 %v128
    %v145 = vunpack.c.l.b16 %v129
    %v146 = vunpack.c.l.b16 %v130
    %v147 = vunpack.c.l.b16 %v131
    %v148 = vunpack.c.l.b16 %v132
    %v149 = vpack.c.b16 %v142, %v141
    %v150 = vpack.c.b16 %v144, %v143
    %v151 = vpack.c.b16 %v146, %v145
    %v152 = vpack.c.b16 %v148, %v147
    %vm157 = vcmask 523264
    %v159 = vsel %vm157, %v124, 0
    %161 = vmatprep.subr.bf16.mxu0 0
    %162 = vmatpush1.bf16.msra.mxu0 0
    %163 = vmatprep.subr.bf16.mxu0 0
    %164 = vmatpush1.bf16.msra.mxu0 0
    %165 = vmatprep.subr.bf16.mxu0 0
    %166 = vmatpush1.bf16.msra.mxu0 0
    %167 = vmatprep.subr.bf16.mxu0 0
    %168 = vmatpush1.bf16.msra.mxu0 0
    %169 = vmatprep.subr.bf16.mxu0 0
    %170 = vmatpush1.bf16.msra.mxu0 %v152
    %171 = vmatprep.subr.bf16.mxu0 0
    %172 = vmatpush1.bf16.msra.mxu0 %v151
    %173 = vmatprep.subr.bf16.mxu0 0
    %174 = vmatpush1.bf16.msra.mxu0 %v150
    %175 = vmatprep.subr.bf16.mxu0 0
    %176 = vmatpush1.bf16.msra.mxu0 %v149
    %177 = vmatprep.subr.bf16.mxu0 0
    %178 = vmatpush2.bf16.msra.mxu0 0
    %179 = vmatprep.subr.bf16.mxu0 0
    %180 = vmatpush2.bf16.msra.mxu0 0
    %181 = vmatprep.subr.bf16.mxu0 0
    %182 = vmatpush2.bf16.msra.mxu0 0
    %183 = vmatprep.subr.bf16.mxu0 0
    %184 = vmatpush2.bf16.msra.mxu0 0
    %185 = vmatprep.subr.bf16.mxu0 0
    %186 = vmatpush2.bf16.msra.mxu0 0
    %187 = vmatprep.subr.bf16.mxu0 0
    %188 = vmatpush2.bf16.msra.mxu0 0
    %189 = vmatprep.subr.bf16.mxu0 0
    %190 = vmatpush2.bf16.msra.mxu0 0
    %191 = vmatprep.subr.bf16.mxu0 0
    %192 = vmatpush2.bf16.msra.mxu0 0
    %193 = vmatprep.mubr.bf16.mxu0 0
    %194 = vmatmul.mubr.bf16.gmra.mxu0 %v159
    %v195 = vpop.f32.mrf.mxu0
    %v196 = vadd.f32 0.0, %v195
    %v197 = vpop.f32.mrf.mxu0
    %v198 = vpop.f32.mrf.mxu0
    %v199 = vadd.f32 0.0, %v198
    %v200 = vpop.f32.mrf.mxu0
    %201 = vdwg.mxu0
    %p202 = scmp.eq.s32.totalorder 0, 0
    // Predicated region
    $region26: #{tpu_custom_call.1} parent=1 // pred_check
      %p203 = pneg %p202
    $region27: #{tpu_custom_call.1} parent=1 // pred_check_branch
      %205 = sbr.rel (%p203) target = $region29
    $region28: #{tpu_custom_call.1} parent=1 // pred_region
      %206 = vst.msk [vmem:[#allocation2] sm:$0xff] %vm56, %v196
      %207 = vst.msk [vmem:[#allocation2 + $0x8] sm:$0xff] %vm56, %v199
    $region29: #{tpu_custom_call.1} parent=1 // pred_fallthru
      _
    %p208 = scmp.gt.s32.totalorder 0, 0
    // Predicated region
    $region30: #{tpu_custom_call.1} parent=1 // pred_check
      %p209 = pneg %p208
    $region31: #{tpu_custom_call.1} parent=1 // pred_check_branch
      %211 = sbr.rel (%p209) target = $region33
    $region32: #{tpu_custom_call.1} parent=1 // pred_region
      %v212 = vld [vmem:[#allocation2] sm:$0xff]
      %v213 = vld [vmem:[#allocation2 + $0x8] sm:$0xff]
      %v214 = vadd.f32 %v212, %v196
      %v215 = vadd.f32 %v213, %v199
      %216 = vst.msk [vmem:[#allocation2] sm:$0xff] %vm56, %v214
      %217 = vst.msk [vmem:[#allocation2 + $0x8] sm:$0xff] %vm56, %v215
    $region33: #{tpu_custom_call.1} parent=1 // pred_fallthru
      _
    // Predicated region
    $region34: #{tpu_custom_call.1} parent=1 // pred_check
      %p218 = pneg %p202
    $region35: #{tpu_custom_call.1} parent=1 // pred_check_branch
      %220 = sbr.rel (%p218) target = $region37
    $region36: #{tpu_custom_call.1} parent=1 // pred_region
      %v221 = vld [vmem:[#allocation2] sm:$0xff]
      %v222 = vld [vmem:[#allocation2 + $0x8] sm:$0xff]
      %v223 = vld [vmem:[%s5] sm:$0x1]
      %v225 = vlaneseq
      %v226 = vshrl.u32 %v225, 7
      %v227 = vsub.s32 0, %v226
      %v228 = vrot.slane %v223, %v227
      %v230 = vadd.f32 %v221, %v228
      %v231 = vadd.f32 %v222, %v228
      %232 = vst.msk [vmem:[#allocation4] sm:$0xff] %vm56, %v230
      %233 = vst.msk [vmem:[#allocation4 + $0x8] sm:$0xff] %vm56, %v231
    $region37: #{tpu_custom_call.1} parent=1 // pred_fallthru
      _
    // Predicated region
    $region38: #{tpu_custom_call.1} parent=1 // pred_check
      _
    $region39: #{tpu_custom_call.1} parent=1 // pred_check_branch
      %235 = sbr.rel (0) target = $region41
    $region40: #{tpu_custom_call.1} parent=1 // pred_region
      %s237 = ssub.s32 256, 256
      %238 = vsyncadd [#allocation5], %s237
      %s239 = sshll.u32 [#allocation4], 4
      %s240 = int_to_ptr.vmem [resolvable:$true] %s239
      %245 = dma.vmem_to_hbm [thread:$0]  %s240, 256, %s6, [#allocation5], 128, 128, 8
    $region41: #{tpu_custom_call.1} parent=1 // pred_fallthru
      _
    // Predicated region
    $region42: #{tpu_custom_call.1} parent=1 // pred_check
      _
    $region43: #{tpu_custom_call.1} parent=1 // pred_check_branch
      %247 = sbr.rel (0) target = $region45
    $region44: #{tpu_custom_call.1} parent=1 // pred_region
      %248 = dma.done [#allocation5], 256
    $region45: #{tpu_custom_call.1} parent=1 // pred_fallthru
      _
    %249 = vsyncpa [#allocation5], 1

</llo_original>
